<compile_context>
chip_gen: v5e
topology: v5e:2x2
jax: 0.10.0
libtpu: 0.0.40
codegen_flags: <defaults>
</compile_context>

<pallas_src>
import jax
import jax.numpy as jnp
from jax.experimental import pallas as pl
from jax.experimental.pallas import tpu as pltpu


def _round_up(x, m):
    return (x + m - 1) // m * m


def _pick_lane_tile(c_in, c_out, nl2, budget_bytes=32 * 1024 * 1024, max_tile=2048):
    """Largest lane tile (multiple of 128, <= max_tile) whose double-buffered
    working set (even + odd f32 inputs, f32 output block) fits the budget.
    Budget is chosen to leave headroom under v7x's 64 MiB VMEM (and the default
    32 MiB scoped limit is raised explicitly via vmem_limit_bytes below)."""
    per_col = 2 * 2 * c_in * 4 + 2 * c_out * 4  # 2 inputs x 2 bufs x f32 + out x 2 bufs x f32
    tl = budget_bytes // max(per_col, 1)
    tl = max(128, min(max_tile, tl))
    tl = (tl // 128) * 128
    return min(tl, _round_up(nl2, 128))


def _transition1d_kernel(xe_ref, xo_ref, scale_ref, shift_ref, w_ref, o_ref):
    # xe_ref / xo_ref: (C, TL)  even / odd sequence positions (pre-deinterleaved)
    # scale_ref:       (C, 1)   BN scale = gamma / sqrt(var + eps)
    # shift_ref:       (C, 1)   BN shift = beta - mean * scale
    # w_ref:           (Cout, C) conv1x1 weight (f32 or bf16)
    # o_ref:           (Cout, TL)
    scale = scale_ref[...]
    shift = shift_ref[...]
    # BN + ReLU in f32 on the VPU (v5e has no bf16 VALU).
    ye = jnp.maximum(xe_ref[...] * scale + shift, 0.0)
    yo = jnp.maximum(xo_ref[...] * scale + shift, 0.0)
    # AvgPool1d(k=2, s=2): purely elementwise (no pool matrix, no lane shuffles).
    pooled = (ye + yo) * 0.5
    # 1x1 conv = channel-mixing matmul on the MXU; operands optionally bf16,
    # accumulation always f32.
    pooled = pooled.astype(w_ref.dtype)
    o_ref[...] = jnp.dot(
        w_ref[...], pooled, preferred_element_type=jnp.float32
    ).astype(o_ref.dtype)


def transition1d(x, gamma, beta, running_mean, running_var, conv_w,
                 eps=1e-5, mxu_dtype=jnp.float32, max_lane_tile=2048):
    """x: (N, C, L) float32, conv_w: (Cout, C). Returns (N, Cout, L//2) float32.

    mxu_dtype=jnp.bfloat16 feeds bf16 operands to the MXU (f32 accumulation);
    recommended on v6e/v7x when the ~1e-2 relative error is acceptable.
    """
    N, C, L = x.shape
    Cout = conv_w.shape[0]
    if L % 2:                       # AvgPool1d floor behavior: drop trailing element
        x = x[..., : L - 1]
        L -= 1
    L2 = L // 2
    NL2 = N * L2

    # --- BN inference-form affine params (plain JAX glue) ---
    scale = (gamma / jnp.sqrt(running_var.astype(jnp.float32) + eps)).astype(jnp.float32)
    shift = (beta.astype(jnp.float32) - running_mean.astype(jnp.float32) * scale)
    scale = scale.reshape(C, 1)
    shift = shift.reshape(C, 1)

    # --- Layout plumbing (XLA, outside the kernel) ---
    # channels -> sublanes, (batch * pooled-position) -> lanes, and deinterleave
    # the adjacent position pairs so the pool is elementwise in-kernel.
    xt = jnp.transpose(x.astype(jnp.float32), (1, 0, 2)).reshape(C, NL2, 2)
    x_even = xt[..., 0]             # (C, N*L2)   positions 0, 2, 4, ...
    x_odd = xt[..., 1]              # (C, N*L2)   positions 1, 3, 5, ...

    # --- Lane tiling: lane-dense blocks, multiples of 128 ---
    TL = _pick_lane_tile(C, Cout, NL2, max_tile=max_lane_tile)
    NL2p = _round_up(NL2, TL)
    if NL2p != NL2:
        pad = NL2p - NL2
        x_even = jnp.pad(x_even, ((0, 0), (0, pad)))
        x_odd = jnp.pad(x_odd, ((0, 0), (0, pad)))
    n_tiles = NL2p // TL

    w = conv_w.astype(mxu_dtype)    # resident weight; bf16 halves its VMEM/HBM bytes

    out2d = pl.pallas_call(
        _transition1d_kernel,
        out_shape=jax.ShapeDtypeStruct((Cout, NL2p), jnp.float32),
        grid_spec=pltpu.PrefetchScalarGridSpec(
            num_scalar_prefetch=0,
            grid=(n_tiles,),
            in_specs=[
                pl.BlockSpec((C, TL), lambda t: (0, t)),     # even positions
                pl.BlockSpec((C, TL), lambda t: (0, t)),     # odd positions
                pl.BlockSpec((C, 1), lambda t: (0, 0)),      # BN scale (resident)
                pl.BlockSpec((C, 1), lambda t: (0, 0)),      # BN shift (resident)
                pl.BlockSpec((Cout, C), lambda t: (0, 0)),   # conv weight (resident)
            ],
            out_specs=pl.BlockSpec((Cout, TL), lambda t: (0, t)),
        ),
        compiler_params=pltpu.CompilerParams(
            dimension_semantics=("parallel",),
            vmem_limit_bytes=48 * 1024 * 1024,   # headroom below v7x's 64 MiB
        ),
    )(x_even, x_odd, scale, shift, w)

    # --- Back to PyTorch (N, Cout, L//2) layout ---
    out = out2d[:, :NL2].reshape(Cout, N, L2)
    return jnp.transpose(out, (1, 0, 2))


def _reference(x, gamma, beta, running_mean, running_var, conv_w, eps=1e-5):
    scale = gamma / jnp.sqrt(running_var + eps)
    shift = beta - running_mean * scale
    y = x * scale[None, :, None] + shift[None, :, None]
    y = jnp.maximum(y, 0.0)
    z = jnp.einsum("oc,ncl->nol", conv_w, y)
    n, cout, l = z.shape
    return z.reshape(n, cout, l // 2, 2).mean(-1)


if __name__ == "__main__":
    key = jax.random.PRNGKey(0)
    N, C_in, C_out, L = 2, 8, 4, 16

    k_x, k_g, k_b, k_m, k_v, k_w = jax.random.split(key, 6)
    x = jax.random.normal(k_x, (N, C_in, L), dtype=jnp.float32)

    # Synthetic BatchNorm1d(C_in) + Conv1d(C_in, C_out, k=1, bias=False) params.
    gamma = 1.0 + 0.1 * jax.random.normal(k_g, (C_in,), dtype=jnp.float32)
    beta = 0.1 * jax.random.normal(k_b, (C_in,), dtype=jnp.float32)
    running_mean = 0.1 * jax.random.normal(k_m, (C_in,), dtype=jnp.float32)
    running_var = 1.0 + 0.1 * jax.random.uniform(k_v, (C_in,), dtype=jnp.float32)
    conv_w = jax.random.normal(k_w, (C_out, C_in), dtype=jnp.float32) * 0.1

    ref = _reference(x, gamma, beta, running_mean, running_var, conv_w)

    # f32 MXU path (exact vs PyTorch-semantics f32 reference).
    out = transition1d(x, gamma, beta, running_mean, running_var, conv_w)
    out = jax.block_until_ready(out)
    assert out.shape == (N, C_out, L // 2), out.shape
    assert jnp.allclose(out, ref, atol=1e-5, rtol=1e-5), "f32 mismatch vs JAX reference"

    # bf16-operand MXU path (perf path for v6e/v7x; f32 accumulation, loose tolerance).
    out_bf16 = transition1d(x, gamma, beta, running_mean, running_var, conv_w,
                            mxu_dtype=jnp.bfloat16)
    out_bf16 = jax.block_until_ready(out_bf16)
    assert jnp.allclose(out_bf16, ref, atol=5e-2, rtol=5e-2), "bf16 mismatch vs JAX reference"

    print("KERNEL_OK")
</pallas_src>

<mosaic_0001>
module attributes {stable_mosaic.version = 11 : i64} {
  func.func @_transition1d_kernel(%arg0: i32, %arg1: memref<8x128xf32, #tpu.memory_space<vmem>>, %arg2: memref<8x128xf32, #tpu.memory_space<vmem>>, %arg3: memref<8x1xf32, #tpu.memory_space<vmem>>, %arg4: memref<8x1xf32, #tpu.memory_space<vmem>>, %arg5: memref<4x8xf32, #tpu.memory_space<vmem>>, %arg6: memref<4x128xf32, #tpu.memory_space<vmem>>) attributes {dimension_semantics = [#tpu.dimension_semantics<parallel>], iteration_bounds = array<i64: 1>, scalar_prefetch = 0 : i64, scratch_operands = 0 : i64, tpu.core_type = #tpu.core_type<tc>, window_params = [{transform_indices = @transform_0, window_bounds = array<i64: 8, 128>}, {transform_indices = @transform_1, window_bounds = array<i64: 8, 128>}, {pipeline_mode = #tpu.pipeline_mode<synchronous>, transform_indices = @transform_2, window_bounds = array<i64: 8, 1>}, {pipeline_mode = #tpu.pipeline_mode<synchronous>, transform_indices = @transform_3, window_bounds = array<i64: 8, 1>}, {pipeline_mode = #tpu.pipeline_mode<synchronous>, transform_indices = @transform_4, window_bounds = array<i64: 4, 8>}, {transform_indices = @transform_5, window_bounds = array<i64: 4, 128>}]} {
    %c0 = arith.constant 0 : index
    %c0_0 = arith.constant 0 : index
    %0 = vector.load %arg3[%c0, %c0_0] : memref<8x1xf32, #tpu.memory_space<vmem>>, vector<8x1xf32>
    %c0_1 = arith.constant 0 : index
    %c0_2 = arith.constant 0 : index
    %1 = vector.load %arg4[%c0_1, %c0_2] : memref<8x1xf32, #tpu.memory_space<vmem>>, vector<8x1xf32>
    %c0_3 = arith.constant 0 : index
    %c0_4 = arith.constant 0 : index
    %2 = vector.load %arg1[%c0_3, %c0_4] : memref<8x128xf32, #tpu.memory_space<vmem>>, vector<8x128xf32>
    %3 = vector.broadcast %0 : vector<8x1xf32> to vector<8x128xf32>
    %4 = arith.mulf %2, %3 : vector<8x128xf32>
    %5 = vector.broadcast %1 : vector<8x1xf32> to vector<8x128xf32>
    %6 = arith.addf %4, %5 : vector<8x128xf32>
    %cst = arith.constant 0.000000e+00 : f32
    %7 = vector.broadcast %cst : f32 to vector<8x128xf32>
    %8 = arith.maximumf %6, %7 : vector<8x128xf32>
    %c0_5 = arith.constant 0 : index
    %c0_6 = arith.constant 0 : index
    %9 = vector.load %arg2[%c0_5, %c0_6] : memref<8x128xf32, #tpu.memory_space<vmem>>, vector<8x128xf32>
    %10 = vector.broadcast %0 : vector<8x1xf32> to vector<8x128xf32>
    %11 = arith.mulf %9, %10 : vector<8x128xf32>
    %12 = vector.broadcast %1 : vector<8x1xf32> to vector<8x128xf32>
    %13 = arith.addf %11, %12 : vector<8x128xf32>
    %cst_7 = arith.constant 0.000000e+00 : f32
    %14 = vector.broadcast %cst_7 : f32 to vector<8x128xf32>
    %15 = arith.maximumf %13, %14 : vector<8x128xf32>
    %16 = arith.addf %8, %15 : vector<8x128xf32>
    %cst_8 = arith.constant 5.000000e-01 : f32
    %17 = vector.broadcast %cst_8 : f32 to vector<8x128xf32>
    %18 = arith.mulf %16, %17 : vector<8x128xf32>
    %c0_9 = arith.constant 0 : index
    %c0_10 = arith.constant 0 : index
    %19 = vector.load %arg5[%c0_9, %c0_10] : memref<4x8xf32, #tpu.memory_space<vmem>>, vector<4x8xf32>
    %cst_11 = arith.constant dense<0.000000e+00> : vector<4x128xf32>
    %20 = tpu.matmul %19, %18, %cst_11 {dimension_numbers = #tpu.dot_dimension_numbers<[1], [0], [0], [1], [0, 0, 1, 1], [], []>} : vector<4x8xf32>, vector<8x128xf32>, vector<4x128xf32> -> vector<4x128xf32>
    %c0_12 = arith.constant 0 : index
    %c0_13 = arith.constant 0 : index
    %21 = vector.load %arg6[%c0_12, %c0_13] : memref<4x128xf32, #tpu.memory_space<vmem>>, vector<4x128xf32>
    tpu.vector_store %arg6[%c0_12, %c0_13], %20 {strides = array<i32>} : memref<4x128xf32, #tpu.memory_space<vmem>>, vector<4x128xf32>,
    return
  }
  func.func @transform_0(%arg0: i32) -> (i32, i32) {
    %c0_i32 = arith.constant 0 : i32
    %c0_i32_0 = arith.constant 0 : i32
    return %c0_i32, %arg0 : i32, i32
  }
  func.func @transform_1(%arg0: i32) -> (i32, i32) {
    %c0_i32 = arith.constant 0 : i32
    %c0_i32_0 = arith.constant 0 : i32
    return %c0_i32, %arg0 : i32, i32
  }
  func.func @transform_2(%arg0: i32) -> (i32, i32) {
    %c0_i32 = arith.constant 0 : i32
    %c0_i32_0 = arith.constant 0 : i32
    %c0_i32_1 = arith.constant 0 : i32
    return %c0_i32, %c0_i32_0 : i32, i32
  }
  func.func @transform_3(%arg0: i32) -> (i32, i32) {
    %c0_i32 = arith.constant 0 : i32
    %c0_i32_0 = arith.constant 0 : i32
    %c0_i32_1 = arith.constant 0 : i32
    return %c0_i32, %c0_i32_0 : i32, i32
  }
  func.func @transform_4(%arg0: i32) -> (i32, i32) {
    %c0_i32 = arith.constant 0 : i32
    %c0_i32_0 = arith.constant 0 : i32
    %c0_i32_1 = arith.constant 0 : i32
    return %c0_i32, %c0_i32_0 : i32, i32
  }
  func.func @transform_5(%arg0: i32) -> (i32, i32) {
    %c0_i32 = arith.constant 0 : i32
    %c0_i32_0 = arith.constant 0 : i32
    return %c0_i32, %arg0 : i32, i32
  }
}

</mosaic_0001>

<llo_original>
// kernel: tpu_custom_call.1
$region0: #{tpu_custom_call.1}
  #allocation0 [shape = 'u32[]', space=smem, size = 0x4, offset = 0x4, fixed_abs, tag = 'smem constant byte address 0x4 - core index']
  #allocation1 [shape = 'u32[72,128]{1,0:T(1,128)}', space=vmem, size = 0x9000, scoped, tag = 'internal scratch']
  %s0 = inlined_call_operand.vmem [shape: f32[8,128], index: 0, kind: input, shape index: {}]
  %s1 = inlined_call_operand.vmem [shape: f32[8,128], index: 1, kind: input, shape index: {}]
  %s2 = inlined_call_operand.vmem [shape: f32[8,1], index: 2, kind: input, shape index: {}]
  %s3 = inlined_call_operand.vmem [shape: f32[8,1], index: 3, kind: input, shape index: {}]
  %s4 = inlined_call_operand.hbm [shape: f32[4,8], index: 4, kind: input, shape index: {}]
  %s5 = inlined_call_operand.hbm [shape: f32[4,128], index: 5, kind: output, shape index: {}]
  %s6 = sld [smem:[#allocation0]]
  $region34: #{tpu_custom_call.1} parent=0
    _
  %s8 = ssub.s32 1, %s6
  %s9 = scalar_select 0, %s8, %s6
  $region1: #{tpu_custom_call.1} parent=0
    #allocation2 [shape = 'u8[2048]{0}', space=vmem, size = 0x800, scoped, tag = 'input window, operand 4, single buffered']
    #allocation3 [shape = 's32[1]{0}', space=sflag, size = 0x4, scoped, tag = 'scoped memory for tpu_custom_call.1']
    #allocation4 [shape = 's32[1]{0}', space=sflag, size = 0x4, scoped, tag = 'scoped memory for tpu_custom_call.1']
    #allocation5 [shape = 'u8[2048]{0}', space=vmem, size = 0x800, scoped, tag = 'output window, operand 0, single buffered']
    %10 = vsyncpa [#allocation3], 0
    %11 = vsyncpa [#allocation4], 0
    // Predicated region
    $region2: #{tpu_custom_call.1} parent=1 // pred_check
      _
    $region3: #{tpu_custom_call.1} parent=1 // pred_check_branch
      %13 = sbr.rel (0) target = $region5
    $region4: #{tpu_custom_call.1} parent=1 // pred_region
      _
    $region5: #{tpu_custom_call.1} parent=1 // pred_fallthru
      _
    // Predicated region
    $region6: #{tpu_custom_call.1} parent=1 // pred_check
      _
    $region7: #{tpu_custom_call.1} parent=1 // pred_check_branch
      %15 = sbr.rel (0) target = $region9
    $region8: #{tpu_custom_call.1} parent=1 // pred_region
      _
    $region9: #{tpu_custom_call.1} parent=1 // pred_fallthru
      _
    // Predicated region
    $region10: #{tpu_custom_call.1} parent=1 // pred_check
      _
    $region11: #{tpu_custom_call.1} parent=1 // pred_check_branch
      %17 = sbr.rel (0) target = $region13
    $region12: #{tpu_custom_call.1} parent=1 // pred_region
      _
    $region13: #{tpu_custom_call.1} parent=1 // pred_fallthru
      _
    // Predicated region
    $region14: #{tpu_custom_call.1} parent=1 // pred_check
      _
    $region15: #{tpu_custom_call.1} parent=1 // pred_check_branch
      %19 = sbr.rel (0) target = $region17
    $region16: #{tpu_custom_call.1} parent=1 // pred_region
      _
    $region17: #{tpu_custom_call.1} parent=1 // pred_fallthru
      _
    // Predicated region
    $region18: #{tpu_custom_call.1} parent=1 // pred_check
      _
    $region19: #{tpu_custom_call.1} parent=1 // pred_check_branch
      %21 = sbr.rel (0) target = $region21
    $region20: #{tpu_custom_call.1} parent=1 // pred_region
      %23 = vsyncadd [#allocation3], 0
      %s25 = sshll.u32 %s4, 4
      %s26 = int_to_ptr.hbm [resolvable:$true] %s25
      %s27 = sshll.u32 [#allocation2], 4
      %s28 = int_to_ptr.vmem [resolvable:$true] %s27
      %30 = dma.hbm_to_vmem [thread:$0]  %s26, 64, %s28, [#allocation3]
    $region21: #{tpu_custom_call.1} parent=1 // pred_fallthru
      _
    // Predicated region
    $region22: #{tpu_custom_call.1} parent=1 // pred_check
      _
    $region23: #{tpu_custom_call.1} parent=1 // pred_check_branch
      %32 = sbr.rel (0) target = $region25
    $region24: #{tpu_custom_call.1} parent=1 // pred_region
      %34 = dma.done [#allocation3], 64
    $region25: #{tpu_custom_call.1} parent=1 // pred_fallthru
      _
    %v35 = vld [vmem:[%s2] sm:$0xff]
    %v36 = vld [vmem:[%s3] sm:$0xff]
    %v37 = vld [vmem:[%s0] sm:$0xff]
    %39 = vset.pattern.permute.xlu0 0
    %40 = vperm.xlu0 %39, %v35
    %v41 = vpop.permute.xlu0 %40
    %v43 = vmul.f32 %v37, %v41
    %45 = vset.pattern.permute.xlu0 0
    %46 = vperm.xlu0 %45, %v36
    %v47 = vpop.permute.xlu0 %46
    %v49 = vadd.f32 %v43, %v47
    %v50 = vmax.f32 %v49, 0.0
    %v51 = vld [vmem:[%s1] sm:$0xff]
    %v52 = vmul.f32 %v51, %v41
    %v53 = vadd.f32 %v52, %v47
    %v54 = vmax.f32 %v53, 0.0
    %v55 = vadd.f32 %v50, %v54
    %v56 = vmul.f32 %v55, 0.5
    %v57 = vld [vmem:[#allocation2] sm:$0xf]
    %vm58 = vcmask 64512
    %v60 = vsel %vm58, %v57, 0
    %62 = vmatpush.msra.mxu0 0.0
    %63 = vmatpush.msra.mxu0 0.0
    %64 = vmatpush.msra.mxu0 0.0
    %65 = vmatpush.msra.mxu0 0.0
    %66 = vmatpush.msra.mxu0 0.0
    %67 = vmatpush.msra.mxu0 0.0
    %68 = vmatpush.msra.mxu0 0.0
    %69 = vmatpush.msra.mxu0 0.0
    %70 = vmatpush.msra.mxu0 0.0
    %71 = vmatpush.msra.mxu0 0.0
    %72 = vmatpush.msra.mxu0 0.0
    %73 = vmatpush.msra.mxu0 0.0
    %74 = vmatpush.msra.mxu0 0.0
    %75 = vmatpush.msra.mxu0 0.0
    %76 = vmatpush.msra.mxu0 0.0
    %77 = vmatpush.msra.mxu0 %v56
    %78 = vmatmul.f32.gmra.mxu0 %v60
    %v79 = vpop.f32.mrf.mxu0
    %v80 = vadd.f32 0.0, %v79
    %81 = vdwg.mxu0
    %82 = vst [vmem:[#allocation5] sm:$0xf] %v80
    // Predicated region
    $region26: #{tpu_custom_call.1} parent=1 // pred_check
      _
    $region27: #{tpu_custom_call.1} parent=1 // pred_check_branch
      %84 = sbr.rel (0) target = $region29
    $region28: #{tpu_custom_call.1} parent=1 // pred_region
      %86 = vsyncadd [#allocation4], 0
      %s88 = sshll.u32 [#allocation5], 4
      %s89 = int_to_ptr.vmem [resolvable:$true] %s88
      %s90 = sshll.u32 %s5, 4
      %s91 = int_to_ptr.hbm [resolvable:$true] %s90
      %93 = dma.vmem_to_hbm [thread:$0]  %s89, 64, %s91, [#allocation4]
    $region29: #{tpu_custom_call.1} parent=1 // pred_fallthru
      _
    // Predicated region
    $region30: #{tpu_custom_call.1} parent=1 // pred_check
      _
    $region31: #{tpu_custom_call.1} parent=1 // pred_check_branch
      %95 = sbr.rel (0) target = $region33
    $region32: #{tpu_custom_call.1} parent=1 // pred_region
      %97 = dma.done [#allocation4], 64
    $region33: #{tpu_custom_call.1} parent=1 // pred_fallthru
      _
    %98 = vsyncpa [#allocation3], 1
    %99 = vsyncpa [#allocation4], 1

</llo_original>
